<compile_context>
chip_gen: v6e
topology: v6e:2x2x1
jax: 0.10.0
libtpu: 0.0.40
codegen_flags: <defaults>
</compile_context>

<pallas_src>
import functools

import jax
import jax.numpy as jnp
from jax.experimental import pallas as pl
from jax.experimental.pallas import tpu as pltpu


def _round_up(x: int, m: int) -> int:
    return (x + m - 1) // m * m


def _vmem_capacity_bytes() -> int:
    """Physical VMEM of the local TPU generation (fallback: v7x's 64 MiB)."""
    try:
        info = pltpu.get_tpu_info()
        for attr in ("vmem_capacity_bytes", "vmem_bytes", "vmem_size_bytes"):
            v = getattr(info, attr, None)
            if v:
                return int(v)
    except Exception:
        pass
    return 64 * 1024 * 1024


def _default_vmem_limit_bytes() -> int:
    cap = _vmem_capacity_bytes()
    # ~70% of physical VMEM: ~45 MiB on v7x (64 MiB), ~90 MiB on v5e/v6e (128 MiB).
    return int(min(max(cap * 7 // 10, 32 * 1024 * 1024), 100 * 1024 * 1024))


def _kl_rows(s, t, inv_temp):
    """Per-row KL(softmax(t/T) || softmax(s/T)).

    s, t: (num_choices, tile) float32 -- choices on sublanes, rows on the
    128-lane axis.  Returns (1, tile).
    """
    s = s * inv_temp
    t = t * inv_temp

    # log_softmax(student / T), reduced over the (small) choice axis.
    s_shift = s - jnp.max(s, axis=0, keepdims=True)
    log_q = s_shift - jnp.log(jnp.sum(jnp.exp(s_shift), axis=0, keepdims=True))

    # softmax(teacher / T) without a per-element divide:
    #   sum_j p_j (log p_j - log q_j) = (1/Z) * sum_j e_j (log p_j - log q_j)
    t_shift = t - jnp.max(t, axis=0, keepdims=True)
    t_exp = jnp.exp(t_shift)
    t_sum = jnp.sum(t_exp, axis=0, keepdims=True)
    log_p = t_shift - jnp.log(t_sum)

    num = jnp.sum(t_exp * (log_p - log_q), axis=0, keepdims=True)   # (1, tile)
    r = pl.reciprocal(t_sum, approx=True)    # EUP vrcp (free slot)
    r = r * (2.0 - t_sum * r)                # one Newton step -> ~f32 accuracy
    return num * r                           # (1, tile)


def _fold_lanes_to_128(x):
    """(1, n*128) -> (1, 128) partial sum via static 128-lane chunk adds."""
    n = x.shape[-1] // 128
    if n <= 1:
        return x
    n_acc = min(8, n)  # a few accumulators to break the dependency chain
    accs = [x[:, j * 128:(j + 1) * 128] for j in range(n_acc)]
    for j in range(n_acc, n):
        accs[j % n_acc] = accs[j % n_acc] + x[:, j * 128:(j + 1) * 128]
    total = accs[0]
    for a in accs[1:]:
        total = total + a
    return total


def _tail_mask(tile, rows):
    """(1, tile) bool mask of globally valid rows for the current block."""
    lane = jax.lax.broadcasted_iota(jnp.int32, (1, tile), 1)
    return (pl.program_id(0) * tile + lane) < rows


def _kd_kernel_weighted(s_ref, t_ref, w_ref, out_ref, *, inv_temp, scale, rows):
    tile = s_ref.shape[-1]
    kl = _kl_rows(s_ref[...].astype(jnp.float32),
                  t_ref[...].astype(jnp.float32), inv_temp)
    contrib = kl * w_ref[...] * scale
    # Mask the FINAL contribution (not an operand) so garbage/NaN in the
    # out-of-bounds tail of a partial block can never leak into the sum.
    contrib = jnp.where(_tail_mask(tile, rows), contrib, 0.0)
    out_ref[...] = _fold_lanes_to_128(contrib)


def _kd_kernel_unweighted(s_ref, t_ref, out_ref, *, inv_temp, scale, rows):
    tile = s_ref.shape[-1]
    kl = _kl_rows(s_ref[...].astype(jnp.float32),
                  t_ref[...].astype(jnp.float32), inv_temp)
    contrib = kl * scale
    contrib = jnp.where(_tail_mask(tile, rows), contrib, 0.0)
    out_ref[...] = _fold_lanes_to_128(contrib)


def _reference_loss(student_logits, teacher_logits, temperature, weights=None):
    """Plain-JAX formulation (also serves as the small-problem fast path)."""
    s = student_logits.astype(jnp.float32) / temperature
    t = teacher_logits.astype(jnp.float32) / temperature
    log_q = jax.nn.log_softmax(s, axis=-1)
    log_p = jax.nn.log_softmax(t, axis=-1)
    p = jnp.exp(log_p)
    kl_row = jnp.sum(p * (log_p - log_q), axis=-1) * (temperature ** 2)
    if weights is not None:
        return jnp.sum(kl_row * weights)
    return jnp.sum(kl_row) / student_logits.shape[0]


class KDForMultipleChoice:
    """JAX/Pallas port of Glitter's KDForMultipleChoice forward pass."""

    def __init__(self, teacher_logits: jnp.ndarray, temperature: float,
                 rows_tile: int = 65536, min_pallas_rows: int = 8192):
        self.teacher_logits = teacher_logits  # buffer: (num_ex, num_aug, max_choices)
        self.temperature = float(temperature)
        # rows (lanes) per grid block; big enough to amortize per-step overhead.
        self.rows_tile = max(128, _round_up(int(rows_tile), 128))
        # below this many rows, skip Pallas entirely (XLA fuses the tiny KL fine).
        self.min_pallas_rows = int(min_pallas_rows)
        self._vmem_limit = _default_vmem_limit_bytes()

    # ------------------------------------------------------------------ #

    def _pick_tile(self, rows: int) -> tuple[int, int]:
        padded = _round_up(rows, 128)
        # Conservative per-lane VMEM budget: 2 inputs x 2 pipeline buffers x
        # 8 sublanes x 4B, plus a (1, tile) f32 weights stream (sublane-padded)
        # x 2 buffers; keep buffers under half the limit (rest = temporaries).
        bytes_per_lane = (2 * 2 * 8 * 4) + (2 * 8 * 4)
        tile_cap = max(128, ((self._vmem_limit // 2) // bytes_per_lane) // 128 * 128)
        tile = min(self.rows_tile, tile_cap, padded)
        num_blocks = pl.cdiv(rows, tile)
        if num_blocks == 1 and padded >= 32768:
            # Split big single-block cases so ("parallel",) can feed both
            # TensorCores on v7x megacore (one extra grid step is ~free).
            tile = _round_up(pl.cdiv(padded, 2), 128)
            num_blocks = pl.cdiv(rows, tile)
        return tile, num_blocks

    def _run_kernel(self, student_logits, teacher_logits, weights):
        rows, num_choices = student_logits.shape

        # Small-problem fast path: Pallas fixed costs dominate at tiny batches.
        if rows < self.min_pallas_rows:
            return _reference_loss(student_logits, teacher_logits,
                                   self.temperature, weights)

        tile, num_blocks = self._pick_tile(rows)

        # Lane-dense layout: rows -> lane axis, choices -> sublanes.  Native
        # dtype is preserved (cast to f32 happens inside the kernel).  No pad:
        # the ragged tail of the last block is masked inside the kernel.
        s_t = student_logits.T
        t_t = teacher_logits.T

        inv_temp = 1.0 / self.temperature
        t2 = self.temperature * self.temperature

        in_specs = [
            pl.BlockSpec((num_choices, tile), lambda i: (0, i)),
            pl.BlockSpec((num_choices, tile), lambda i: (0, i)),
        ]
        operands = [s_t, t_t]

        if weights is None:
            # batchmean: fold 1/rows (true rows) into the scale; no weights stream.
            kernel = functools.partial(_kd_kernel_unweighted,
                                       inv_temp=inv_temp, scale=t2 / rows,
                                       rows=rows)
            w_bytes = 0
        else:
            w = weights.reshape(1, rows).astype(jnp.float32)
            in_specs.append(pl.BlockSpec((1, tile), lambda i: (0, i)))
            operands.append(w)
            kernel = functools.partial(_kd_kernel_weighted,
                                       inv_temp=inv_temp, scale=t2, rows=rows)
            w_bytes = rows * 4

        bytes_accessed = (s_t.size * s_t.dtype.itemsize +
                          t_t.size * t_t.dtype.itemsize +
                          w_bytes + num_blocks * 128 * 4)
        cost = pl.CostEstimate(
            flops=12 * rows * num_choices,
            transcendentals=(2 * num_choices + 2) * rows,
            bytes_accessed=bytes_accessed,
        )

        per_block = pl.pallas_call(
            kernel,
            out_shape=jax.ShapeDtypeStruct((1, num_blocks * 128), jnp.float32),
            grid_spec=pltpu.PrefetchScalarGridSpec(
                num_scalar_prefetch=0,
                grid=(num_blocks,),
                in_specs=in_specs,
                out_specs=pl.BlockSpec((1, 128), lambda i: (0, i)),
            ),
            compiler_params=pltpu.CompilerParams(
                dimension_semantics=("parallel",),
                vmem_limit_bytes=self._vmem_limit,
                # Let XLA fuse the transpose / elementwise producers into the
                # pallas_call operands instead of a separate HBM pass.
                allow_input_fusion=[True] * len(operands),
            ),
            cost_estimate=cost,
        )(*operands)

        # Tiny final reduction over per-block lane-dense partials (plain JAX).
        return jnp.sum(per_block)

    # ------------------------------------------------------------------ #

    def __call__(self, student_logits, teacher_logits=None, example_indices=None,
                 augmented_indices=None, weights=None):
        if teacher_logits is None:
            assert example_indices is not None
            if augmented_indices is None:
                augmented_indices = jnp.zeros_like(example_indices)
            num_choices = student_logits.shape[-1]
            teacher_logits = self.teacher_logits[
                example_indices, augmented_indices, :num_choices]
        return self._run_kernel(student_logits, teacher_logits, weights)


if __name__ == "__main__":
    key = jax.random.PRNGKey(0)
    k1, k2, k3, k4, k5, k6, k7 = jax.random.split(key, 7)

    num_examples, num_aug, max_choices = 16, 3, 8
    batch, num_choices = 8, 4
    temperature = 2.0

    teacher_buffer = jax.random.normal(
        k1, (num_examples, num_aug, max_choices), dtype=jnp.float32)

    # min_pallas_rows=0 forces the Pallas kernel path even at small demo shapes.
    module = KDForMultipleChoice(teacher_buffer, temperature, min_pallas_rows=0)

    student_logits = jax.random.normal(k2, (batch, num_choices), dtype=jnp.float32)
    example_indices = jax.random.randint(k3, (batch,), 0, num_examples)
    weights = jax.random.uniform(k4, (batch,), dtype=jnp.float32)

    # Path 1: unweighted, teacher gathered from registered buffer (batchmean).
    loss_unweighted = jax.block_until_ready(
        module(student_logits, example_indices=example_indices))

    # Path 2: weighted, explicit teacher logits.
    teacher_logits = teacher_buffer[example_indices, 0, :num_choices]
    loss_weighted = jax.block_until_ready(
        module(student_logits, teacher_logits=teacher_logits, weights=weights))

    ref_unweighted = _reference_loss(student_logits, teacher_logits, temperature)
    ref_weighted = _reference_loss(student_logits, teacher_logits, temperature,
                                   weights=weights)
    assert jnp.allclose(loss_unweighted, ref_unweighted, atol=1e-5, rtol=1e-5)
    assert jnp.allclose(loss_weighted, ref_weighted, atol=1e-5, rtol=1e-5)

    # Path 3: multi-block grid with a ragged tail (300 rows, 128-lane tiles),
    # f32 and bf16 inputs.
    module_small_tile = KDForMultipleChoice(teacher_buffer, temperature,
                                            rows_tile=128, min_pallas_rows=0)
    rows2 = 300
    s2 = jax.random.normal(k5, (rows2, num_choices), dtype=jnp.float32)
    t2 = jax.random.normal(k6, (rows2, num_choices), dtype=jnp.float32)
    w2 = jax.random.uniform(k7, (rows2,), dtype=jnp.float32)

    loss2_w = jax.block_until_ready(
        module_small_tile(s2, teacher_logits=t2, weights=w2))
    loss2_u = jax.block_until_ready(module_small_tile(s2, teacher_logits=t2))
    assert jnp.allclose(loss2_w, _reference_loss(s2, t2, temperature, weights=w2),
                        atol=1e-4, rtol=1e-4)
    assert jnp.allclose(loss2_u, _reference_loss(s2, t2, temperature),
                        atol=1e-4, rtol=1e-4)

    s2_bf16, t2_bf16 = s2.astype(jnp.bfloat16), t2.astype(jnp.bfloat16)
    loss_bf16 = jax.block_until_ready(
        module_small_tile(s2_bf16, teacher_logits=t2_bf16, weights=w2))
    assert jnp.allclose(loss_bf16,
                        _reference_loss(s2_bf16, t2_bf16, temperature, weights=w2),
                        atol=1e-4, rtol=1e-4)

    # Path 4: default small-problem fast path (bypasses Pallas at tiny batches).
    module_default = KDForMultipleChoice(teacher_buffer, temperature)
    loss_fast = jax.block_until_ready(
        module_default(student_logits, teacher_logits=teacher_logits,
                       weights=weights))
    assert jnp.allclose(loss_fast, ref_weighted, atol=1e-5, rtol=1e-5)

    print("KERNEL_OK")
</pallas_src>

<mosaic_0001>
module attributes {stable_mosaic.version = 11 : i64} {
  func.func @_kd_kernel_unweighted(%arg0: i32, %arg1: memref<4x128xf32, #tpu.memory_space<vmem>>, %arg2: memref<4x128xf32, #tpu.memory_space<vmem>>, %arg3: memref<1x128xf32, #tpu.memory_space<vmem>>) attributes {dimension_semantics = [#tpu.dimension_semantics<parallel>], iteration_bounds = array<i64: 1>, scalar_prefetch = 0 : i64, scratch_operands = 0 : i64, tpu.core_type = #tpu.core_type<tc>, window_params = [{transform_indices = @transform_0, window_bounds = array<i64: 4, 128>}, {transform_indices = @transform_1, window_bounds = array<i64: 4, 128>}, {transform_indices = @transform_2, window_bounds = array<i64: 1, 128>}]} {
    %c0 = arith.constant 0 : index
    %c0_0 = arith.constant 0 : index
    %0 = vector.load %arg1[%c0, %c0_0] : memref<4x128xf32, #tpu.memory_space<vmem>>, vector<4x128xf32>
    %c0_1 = arith.constant 0 : index
    %c0_2 = arith.constant 0 : index
    %1 = vector.load %arg2[%c0_1, %c0_2] : memref<4x128xf32, #tpu.memory_space<vmem>>, vector<4x128xf32>
    %cst = arith.constant 5.000000e-01 : f32
    %2 = vector.broadcast %cst : f32 to vector<4x128xf32>
    %3 = arith.mulf %0, %2 : vector<4x128xf32>
    %cst_3 = arith.constant 5.000000e-01 : f32
    %4 = vector.broadcast %cst_3 : f32 to vector<4x128xf32>
    %5 = arith.mulf %1, %4 : vector<4x128xf32>
    %cst_4 = arith.constant dense<0xFF800000> : vector<128xf32>
    %6 = vector.multi_reduction <maximumf>, %3, %cst_4 [0] : vector<4x128xf32> to vector<128xf32>
    %7 = vector.shape_cast %6 : vector<128xf32> to vector<1x128xf32>
    %8 = vector.broadcast %7 : vector<1x128xf32> to vector<4x128xf32>
    %9 = arith.subf %3, %8 : vector<4x128xf32>
    %10 = math.exp %9 : vector<4x128xf32>
    %cst_5 = arith.constant dense<0.000000e+00> : vector<128xf32>
    %11 = vector.multi_reduction <add>, %10, %cst_5 [0] : vector<4x128xf32> to vector<128xf32>
    %12 = vector.shape_cast %11 : vector<128xf32> to vector<1x128xf32>
    %13 = math.log %12 : vector<1x128xf32>
    %14 = vector.broadcast %13 : vector<1x128xf32> to vector<4x128xf32>
    %15 = arith.subf %9, %14 : vector<4x128xf32>
    %cst_6 = arith.constant dense<0xFF800000> : vector<128xf32>
    %16 = vector.multi_reduction <maximumf>, %5, %cst_6 [0] : vector<4x128xf32> to vector<128xf32>
    %17 = vector.shape_cast %16 : vector<128xf32> to vector<1x128xf32>
    %18 = vector.broadcast %17 : vector<1x128xf32> to vector<4x128xf32>
    %19 = arith.subf %5, %18 : vector<4x128xf32>
    %20 = math.exp %19 : vector<4x128xf32>
    %cst_7 = arith.constant dense<0.000000e+00> : vector<128xf32>
    %21 = vector.multi_reduction <add>, %20, %cst_7 [0] : vector<4x128xf32> to vector<128xf32>
    %22 = vector.shape_cast %21 : vector<128xf32> to vector<1x128xf32>
    %23 = math.log %22 : vector<1x128xf32>
    %24 = vector.broadcast %23 : vector<1x128xf32> to vector<4x128xf32>
    %25 = arith.subf %19, %24 : vector<4x128xf32>
    %26 = arith.subf %25, %15 : vector<4x128xf32>
    %27 = arith.mulf %20, %26 : vector<4x128xf32>
    %cst_8 = arith.constant dense<0.000000e+00> : vector<128xf32>
    %28 = vector.multi_reduction <add>, %27, %cst_8 [0] : vector<4x128xf32> to vector<128xf32>
    %29 = vector.shape_cast %28 : vector<128xf32> to vector<1x128xf32>
    %30 = tpu.reciprocal %22 {approx = true} : vector<1x128xf32> -> vector<1x128xf32>
    %31 = arith.mulf %22, %30 : vector<1x128xf32>
    %cst_9 = arith.constant 2.000000e+00 : f32
    %32 = vector.broadcast %cst_9 : f32 to vector<1x128xf32>
    %33 = arith.subf %32, %31 : vector<1x128xf32>
    %34 = arith.mulf %30, %33 : vector<1x128xf32>
    %35 = arith.mulf %29, %34 : vector<1x128xf32>
    %cst_10 = arith.constant 5.000000e-01 : f32
    %36 = vector.broadcast %cst_10 : f32 to vector<1x128xf32>
    %37 = arith.mulf %35, %36 : vector<1x128xf32>
    %38 = tpu.iota {dimensions = array<i32: 1>} : vector<1x128xi32>
    %c128_i32 = arith.constant 128 : i32
    %39 = arith.muli %arg0, %c128_i32 : i32
    %40 = vector.broadcast %39 : i32 to vector<1x128xi32>
    %41 = arith.addi %40, %38 : vector<1x128xi32>
    %c8_i32 = arith.constant 8 : i32
    %42 = vector.broadcast %c8_i32 : i32 to vector<1x128xi32>
    %43 = arith.cmpi slt, %41, %42 : vector<1x128xi32>
    %cst_11 = arith.constant 0.000000e+00 : f32
    %44 = vector.broadcast %cst_11 : f32 to vector<1x128xf32>
    %45 = arith.select %43, %37, %44 : vector<1x128xi1>, vector<1x128xf32>
    %c0_12 = arith.constant 0 : index
    %c0_13 = arith.constant 0 : index
    %46 = vector.load %arg3[%c0_12, %c0_13] : memref<1x128xf32, #tpu.memory_space<vmem>>, vector<1x128xf32>
    tpu.vector_store %arg3[%c0_12, %c0_13], %45 {strides = array<i32>} : memref<1x128xf32, #tpu.memory_space<vmem>>, vector<1x128xf32>,
    return
  }
  func.func @transform_0(%arg0: i32) -> (i32, i32) {
    %c0_i32 = arith.constant 0 : i32
    %c0_i32_0 = arith.constant 0 : i32
    return %c0_i32, %arg0 : i32, i32
  }
  func.func @transform_1(%arg0: i32) -> (i32, i32) {
    %c0_i32 = arith.constant 0 : i32
    %c0_i32_0 = arith.constant 0 : i32
    return %c0_i32, %arg0 : i32, i32
  }
  func.func @transform_2(%arg0: i32) -> (i32, i32) {
    %c0_i32 = arith.constant 0 : i32
    %c0_i32_0 = arith.constant 0 : i32
    return %c0_i32, %arg0 : i32, i32
  }
}

</mosaic_0001>

<llo_original>
// kernel: tpu_custom_call.1
$region0: #{tpu_custom_call.1}
  #allocation0 [shape = 'u32[]', space=smem, size = 0x4, offset = 0x4, fixed_abs, tag = 'smem constant byte address 0x4 - core index']
  #allocation1 [shape = 'u32[144,128]{1,0:T(1,128)}', space=vmem, size = 0x12000, scoped, tag = 'internal scratch']
  %s0 = inlined_call_operand.hbm [shape: f32[4,8], index: 0, kind: input, shape index: {}]
  %s1 = inlined_call_operand.hbm [shape: f32[4,8], index: 1, kind: input, shape index: {}]
  %s2 = inlined_call_operand.hbm [shape: f32[1,128], index: 2, kind: output, shape index: {}]
  %s3 = sld [smem:[#allocation0]]
  $region26: #{tpu_custom_call.1} parent=0
    _
  %s5 = ssub.s32 1, %s3
  %s6 = scalar_select 0, %s5, %s3
  $region1: #{tpu_custom_call.1} parent=0
    #allocation2 [shape = 'u8[2048]{0}', space=vmem, size = 0x800, scoped, tag = 'input window, operand 0, single buffered']
    #allocation3 [shape = 's32[1]{0}', space=sflag, size = 0x4, scoped, tag = 'scoped memory for tpu_custom_call.1']
    #allocation4 [shape = 's32[1]{0}', space=sflag, size = 0x4, scoped, tag = 'scoped memory for tpu_custom_call.1']
    #allocation5 [shape = 'u8[2048]{0}', space=vmem, size = 0x800, scoped, tag = 'input window, operand 1, single buffered']
    #allocation6 [shape = 's32[1]{0}', space=sflag, size = 0x4, scoped, tag = 'scoped memory for tpu_custom_call.1']
    #allocation7 [shape = 'u8[512]{0}', space=vmem, size = 0x400, scoped, tag = 'output window, operand 0, single buffered']
    %7 = vsyncpa [#allocation3], 0
    %8 = vsyncpa [#allocation6], 0
    %9 = vsyncpa [#allocation4], 0
    // Predicated region
    $region2: #{tpu_custom_call.1} parent=1 // pred_check
      _
    $region3: #{tpu_custom_call.1} parent=1 // pred_check_branch
      %11 = sbr.rel (0) target = $region5
    $region4: #{tpu_custom_call.1} parent=1 // pred_region
      %s13 = ssub.s32 64, 64
      %14 = vsyncadd [#allocation3], %s13
      %s16 = sshll.u32 [#allocation2], 4
      %s17 = int_to_ptr.vmem [resolvable:$true] %s16
      %19 = dma.hbm_to_vmem [thread:$0]  %s0, 64, %s17, [#allocation3]
    $region5: #{tpu_custom_call.1} parent=1 // pred_fallthru
      _
    // Predicated region
    $region6: #{tpu_custom_call.1} parent=1 // pred_check
      _
    $region7: #{tpu_custom_call.1} parent=1 // pred_check_branch
      %21 = sbr.rel (0) target = $region9
    $region8: #{tpu_custom_call.1} parent=1 // pred_region
      %s23 = ssub.s32 64, 64
      %24 = vsyncadd [#allocation6], %s23
      %s26 = sshll.u32 [#allocation5], 4
      %s27 = int_to_ptr.vmem [resolvable:$true] %s26
      %29 = dma.hbm_to_vmem [thread:$0]  %s1, 64, %s27, [#allocation6]
    $region9: #{tpu_custom_call.1} parent=1 // pred_fallthru
      _
    // Predicated region
    $region10: #{tpu_custom_call.1} parent=1 // pred_check
      _
    $region11: #{tpu_custom_call.1} parent=1 // pred_check_branch
      %31 = sbr.rel (0) target = $region13
    $region12: #{tpu_custom_call.1} parent=1 // pred_region
      %32 = dma.done [#allocation3], 64
    $region13: #{tpu_custom_call.1} parent=1 // pred_fallthru
      _
    // Predicated region
    $region14: #{tpu_custom_call.1} parent=1 // pred_check
      _
    $region15: #{tpu_custom_call.1} parent=1 // pred_check_branch
      %34 = sbr.rel (0) target = $region17
    $region16: #{tpu_custom_call.1} parent=1 // pred_region
      %35 = dma.done [#allocation6], 64
    $region17: #{tpu_custom_call.1} parent=1 // pred_fallthru
      _
    %v36 = vld [vmem:[#allocation2] sm:$0xf]
    %v37 = vld [vmem:[#allocation5] sm:$0xf]
    %v38 = vmul.f32 %v36, 0.5
    %v39 = vmul.f32 %v37, 0.5
    %vm40 = vcmask 1043456
    %v41 = vsel %vm40, %v38, -inf
    %v42 = vrot.slane %v41, 4
    %v43 = vmax.f32 %v41, %v42
    %v44 = vrot.slane %v43, 2
    %v45 = vmax.f32 %v43, %v44
    %v46 = vrot.slane %v45, 1
    %v47 = vmax.f32 %v45, %v46
    %v48 = vsub.f32 %v38, %v47
    %v49 = vmul.f32 %v48, 1.442695
    %v50 = vpow.pop %v49
    %v51 = vsel %vm40, %v50, 0.0
    %v52 = vrot.slane %v51, 4
    %v53 = vadd.f32 %v51, %v52
    %v54 = vrot.slane %v53, 2
    %v55 = vadd.f32 %v53, %v54
    %v56 = vrot.slane %v55, 1
    %v57 = vadd.f32 %v55, %v56
    %v58 = vlog2.pop %v57
    %v59 = vmul.f32 %v58, 0.6931472
    %v60 = vsub.f32 %v48, %v59
    %v61 = vsel %vm40, %v39, -inf
    %v62 = vrot.slane %v61, 4
    %v63 = vmax.f32 %v61, %v62
    %v64 = vrot.slane %v63, 2
    %v65 = vmax.f32 %v63, %v64
    %v66 = vrot.slane %v65, 1
    %v67 = vmax.f32 %v65, %v66
    %v68 = vsub.f32 %v39, %v67
    %v69 = vmul.f32 %v68, 1.442695
    %v70 = vpow.pop %v69
    %v71 = vsel %vm40, %v70, 0.0
    %v72 = vrot.slane %v71, 4
    %v73 = vadd.f32 %v71, %v72
    %v74 = vrot.slane %v73, 2
    %v75 = vadd.f32 %v73, %v74
    %v76 = vrot.slane %v75, 1
    %v77 = vadd.f32 %v75, %v76
    %v78 = vlog2.pop %v77
    %v79 = vmul.f32 %v78, 0.6931472
    %v80 = vsub.f32 %v68, %v79
    %v81 = vsub.f32 %v80, %v60
    %v82 = vmul.f32 %v70, %v81
    %v83 = vsel %vm40, %v82, 0.0
    %v84 = vrot.slane %v83, 4
    %v85 = vadd.f32 %v83, %v84
    %v86 = vrot.slane %v85, 2
    %v87 = vadd.f32 %v85, %v86
    %v88 = vrot.slane %v87, 1
    %v89 = vadd.f32 %v87, %v88
    %v90 = vrcp.pop %v77
    %v91 = vmul.f32 %v77, %v90
    %v92 = vsub.f32 2.0, %v91
    %v93 = vmul.f32 %v90, %v92
    %v94 = vmul.f32 %v89, %v93
    %v95 = vmul.f32 %v94, 0.5
    %v96 = vlaneseq
    %v97 = vand.u32 %v96, 127
    %s98 = smul.u32 0, 128
    %v99 = vstv %s98
    %v100 = vadd.s32 %v99, %v97
    %vm101 = vcmp.lt.s32.totalorder %v100, 8
    %v102 = vsel %vm101, %v95, 0.0
    %103 = vst [vmem:[#allocation7] sm:$0x1] %v102
    // Predicated region
    $region18: #{tpu_custom_call.1} parent=1 // pred_check
      _
    $region19: #{tpu_custom_call.1} parent=1 // pred_check_branch
      %105 = sbr.rel (0) target = $region21
    $region20: #{tpu_custom_call.1} parent=1 // pred_region
      %s107 = ssub.s32 16, 16
      %108 = vsyncadd [#allocation4], %s107
      %s110 = sshll.u32 [#allocation7], 4
      %s111 = int_to_ptr.vmem [resolvable:$true] %s110
      %113 = dma.vmem_to_hbm [thread:$0]  %s111, 16, %s2, [#allocation4]
    $region21: #{tpu_custom_call.1} parent=1 // pred_fallthru
      _
    // Predicated region
    $region22: #{tpu_custom_call.1} parent=1 // pred_check
      _
    $region23: #{tpu_custom_call.1} parent=1 // pred_check_branch
      %115 = sbr.rel (0) target = $region25
    $region24: #{tpu_custom_call.1} parent=1 // pred_region
      %116 = dma.done [#allocation4], 16
    $region25: #{tpu_custom_call.1} parent=1 // pred_fallthru
      _
    %117 = vsyncpa [#allocation3], 1
    %118 = vsyncpa [#allocation6], 1
    %119 = vsyncpa [#allocation4], 1

</llo_original>
